<compile_context>
chip_gen: v6e
topology: v6e:2x2x1
jax: 0.10.0
libtpu: 0.0.40
codegen_flags: <defaults>
</compile_context>

<pallas_src>
import jax
import jax.numpy as jnp
from jax.experimental import pallas as pl
from jax.experimental.pallas import tpu as pltpu

# ---------------- model dimensions (small, consistent with the module) ----------------
B = 2                          # batch
C, H, W = 4, 16, 16
IN_DIM = C * H * W             # 1024 flattened image
BACKBONE_OUT = 128             # backbone.out_features
BOTTLENECK_DIM = 256           # bottleneck_dim (default 256)
NUM_CLASSES = 10
HEAD_PAD = 128                 # lane-dense padding of head output (== BACKBONE_OUT lane width)
BN_EPS = 1e-5

# packed-parameter row indices (single [8, BOTTLENECK_DIM] f32 buffer)
ROW_BB, ROW_GAMMA, ROW_BETA, ROW_B2 = 0, 1, 2, 3


def _make_kernel(b_actual: int, pad_b: int):
    """Kernel closure; b_actual is the number of valid (un-padded) batch rows."""
    inv_b = 1.0 / float(b_actual)

    def classifier_kernel(x_ref, wcat_ref, w1_ref, pk_ref, out_ref):
        pk = pk_ref[...]                                          # [8, BOTTLENECK_DIM] f32

        # ---- backbone (stand-in): Linear + ReLU, bf16 x bf16 -> f32 acc on MXU ----
        h = jnp.dot(x_ref[...], wcat_ref[:IN_DIM, :],             # bf16 operands, 1 MXU pass
                    preferred_element_type=jnp.float32)           # [pad_b, BACKBONE_OUT] f32
        bb = pk[ROW_BB:ROW_BB + 1, :BACKBONE_OUT]
        h = jnp.maximum(h + bb, 0.0)

        # Zero the padded batch rows once, on the narrow [pad_b, 128] activation, so every
        # padded row of z below is exactly zero and BN batch stats stay exact over true B rows.
        if b_actual != pad_b:
            row = jax.lax.broadcasted_iota(jnp.int32, (pad_b, 1), 0)
            h = h * (row < b_actual).astype(jnp.float32)

        # ---- bottleneck Linear (bias b1 omitted: cancels exactly under batch-stat BN) ----
        z = jnp.dot(h.astype(jnp.bfloat16), w1_ref[...],
                    preferred_element_type=jnp.float32)           # [pad_b, BOTTLENECK_DIM]

        # ---- BatchNorm1d (training-mode batch statistics, biased var), folded form ----
        mu = jnp.sum(z, axis=0, keepdims=True) * inv_b            # padded z rows are exactly 0
        var = jnp.sum(z * z, axis=0, keepdims=True) * inv_b - mu * mu
        s = pk[ROW_GAMMA:ROW_GAMMA + 1, :] * jax.lax.rsqrt(var + BN_EPS)   # scale
        t = pk[ROW_BETA:ROW_BETA + 1, :] - mu * s                          # shift
        f = jnp.maximum(z * s + t, 0.0)                           # bottleneck ReLU -> features

        # ---- head Linear (lane-dense, head weight zero-padded to HEAD_PAD columns) ----
        pred = jnp.dot(f.astype(jnp.bfloat16), wcat_ref[IN_DIM:, :],
                       preferred_element_type=jnp.float32)        # [pad_b, HEAD_PAD]
        pred = pred + pk[ROW_B2:ROW_B2 + 1, :HEAD_PAD]

        # single lane-dense output slab: [ pred | f ]
        out_ref[:, :HEAD_PAD] = pred.astype(out_ref.dtype)
        out_ref[:, HEAD_PAD:] = f.astype(out_ref.dtype)

    return classifier_kernel


def prepare_params(params):
    """One-time packing of module parameters into kernel-ready buffers.

    Hoisted out of the per-call path (review item): the pad / concat / scatter work below
    is pure overhead for an overhead-bound ~1us kernel and only needs to run once."""
    # lane-dense head weight padding, then one [IN_DIM + BOTTLENECK_DIM, 128] bf16 slab:
    # backbone weight on top, padded head weight below -> one DMA descriptor instead of two.
    w2_pad = jnp.zeros((BOTTLENECK_DIM, HEAD_PAD), jnp.bfloat16)
    w2_pad = w2_pad.at[:, :NUM_CLASSES].set(params["w2"])
    wcat = jnp.concatenate([params["wb"], w2_pad], axis=0)

    # pack the tiny 1-row parameters into a single [8, BOTTLENECK_DIM] f32 buffer
    packed = jnp.zeros((8, BOTTLENECK_DIM), jnp.float32)
    packed = packed.at[ROW_BB, :BACKBONE_OUT].set(params["bb"])
    packed = packed.at[ROW_GAMMA, :].set(params["gamma"])
    packed = packed.at[ROW_BETA, :].set(params["beta"])
    packed = packed.at[ROW_B2, :NUM_CLASSES].set(params["b2"])

    return {"wcat": wcat, "w1": params["w1"], "packed": packed}


def image_classifier_forward(x_nchw, prepared):
    """x_nchw: [B, C, H, W]. Returns (predictions [B, NUM_CLASSES], f [B, BOTTLENECK_DIM])."""
    b = x_nchw.shape[0]
    pad_b = max(8, ((b + 7) // 8) * 8)                            # full sublane tiles
    x_flat = x_nchw.reshape(b, -1).astype(jnp.bfloat16)           # NCHW flatten + bf16 MXU operand
    x_pad = jnp.pad(x_flat, ((0, pad_b - b), (0, 0)))             # [pad_b, IN_DIM]

    vmem = pl.BlockSpec(memory_space=pltpu.MemorySpace.VMEM)

    flops = 2 * pad_b * (IN_DIM * BACKBONE_OUT
                         + BACKBONE_OUT * BOTTLENECK_DIM
                         + BOTTLENECK_DIM * HEAD_PAD)
    bytes_accessed = (pad_b * IN_DIM * 2                          # x (bf16)
                      + (IN_DIM + BOTTLENECK_DIM) * HEAD_PAD * 2  # wcat (bf16)
                      + BACKBONE_OUT * BOTTLENECK_DIM * 2         # w1 (bf16)
                      + 8 * BOTTLENECK_DIM * 4                    # packed params (f32)
                      + pad_b * (HEAD_PAD + BOTTLENECK_DIM) * 4)  # output slab (f32)

    out = pl.pallas_call(
        _make_kernel(b, pad_b),
        out_shape=jax.ShapeDtypeStruct((pad_b, HEAD_PAD + BOTTLENECK_DIM), jnp.float32),
        in_specs=[vmem] * 4,
        out_specs=vmem,
        cost_estimate=pl.CostEstimate(flops=flops,
                                      transcendentals=BOTTLENECK_DIM,
                                      bytes_accessed=bytes_accessed),
    )(x_pad, prepared["wcat"], prepared["w1"], prepared["packed"])

    return out[:b, :NUM_CLASSES], out[:b, HEAD_PAD:]


def init_params(key):
    ks = jax.random.split(key, 6)
    scale = 0.02
    params = {
        # backbone Linear(IN_DIM -> BACKBONE_OUT); stored [in, out], bf16 (MXU-native operand)
        "wb": (scale * jax.random.normal(ks[0], (IN_DIM, BACKBONE_OUT), jnp.float32)).astype(jnp.bfloat16),
        "bb": scale * jax.random.normal(ks[1], (BACKBONE_OUT,), jnp.float32),
        # bottleneck Linear(BACKBONE_OUT -> BOTTLENECK_DIM)
        "w1": (scale * jax.random.normal(ks[2], (BACKBONE_OUT, BOTTLENECK_DIM), jnp.float32)).astype(jnp.bfloat16),
        # b1 kept for module fidelity but NOT fed to the kernel (cancels under train-mode BN)
        "b1": scale * jax.random.normal(ks[3], (BOTTLENECK_DIM,), jnp.float32),
        # BatchNorm1d(BOTTLENECK_DIM) affine params (default init gamma=1, beta=0)
        "gamma": jnp.ones((BOTTLENECK_DIM,), jnp.float32),
        "beta": jnp.zeros((BOTTLENECK_DIM,), jnp.float32),
        # head Linear(BOTTLENECK_DIM -> NUM_CLASSES)
        "w2": (scale * jax.random.normal(ks[4], (BOTTLENECK_DIM, NUM_CLASSES), jnp.float32)).astype(jnp.bfloat16),
        "b2": scale * jax.random.normal(ks[5], (NUM_CLASSES,), jnp.float32),
    }
    return params


def reference_forward(x_nchw, params):
    """Pure-JAX reference (PyTorch-equivalent math with the same bf16-operand matmul policy,
    incl. the b1 bias that cancels under train-mode BN; independent two-pass BN formulas)."""
    b = x_nchw.shape[0]
    x = x_nchw.reshape(b, -1).astype(jnp.bfloat16)
    h = jnp.maximum(jnp.dot(x, params["wb"], preferred_element_type=jnp.float32)
                    + params["bb"][None, :], 0.0)
    z = jnp.dot(h.astype(jnp.bfloat16), params["w1"], preferred_element_type=jnp.float32) \
        + params["b1"][None, :]
    mu = jnp.mean(z, axis=0, keepdims=True)
    var = jnp.mean((z - mu) ** 2, axis=0, keepdims=True)
    f = jnp.maximum((z - mu) * jax.lax.rsqrt(var + BN_EPS) * params["gamma"][None, :]
                    + params["beta"][None, :], 0.0)
    pred = jnp.dot(f.astype(jnp.bfloat16), params["w2"], preferred_element_type=jnp.float32) \
        + params["b2"][None, :]
    return pred, f


if __name__ == "__main__":
    key = jax.random.PRNGKey(0)
    k_x, k_p = jax.random.split(key)
    x = jax.random.normal(k_x, (B, C, H, W), jnp.float32)
    params = init_params(k_p)
    prepared = prepare_params(params)          # one-time packing, outside the per-call path

    pred, feat = image_classifier_forward(x, prepared)
    pred, feat = jax.block_until_ready(pred), jax.block_until_ready(feat)

    pred_ref, feat_ref = reference_forward(x, params)
    assert pred.shape == (B, NUM_CLASSES) and feat.shape == (B, BOTTLENECK_DIM)
    # Logits: weakly coupled to the BN amplification -> tight check.
    assert jnp.allclose(pred, pred_ref, atol=2e-3, rtol=2e-3)
    # Features: train-mode BN with B=2 divides by sqrt(var + 1e-5) and can amplify ulp-level
    # bf16 / accumulation-order differences by up to ~316x in near-degenerate features;
    # real implementation bugs produce O(1) errors, so this still discriminates sharply.
    assert jnp.allclose(feat, feat_ref, atol=2e-2, rtol=2e-2)

    print("KERNEL_OK")
</pallas_src>

<mosaic_0001>
module attributes {stable_mosaic.version = 11 : i64} {
  func.func @classifier_kernel(%arg0: memref<8x1024xbf16, #tpu.memory_space<vmem>>, %arg1: memref<1280x128xbf16, #tpu.memory_space<vmem>>, %arg2: memref<128x256xbf16, #tpu.memory_space<vmem>>, %arg3: memref<8x256xf32, #tpu.memory_space<vmem>>, %arg4: memref<8x384xf32, #tpu.memory_space<vmem>>) attributes {dimension_semantics = [], scalar_prefetch = 0 : i64, scratch_operands = 0 : i64, tpu.core_type = #tpu.core_type<tc>} {
    %c0 = arith.constant 0 : index
    %c0_0 = arith.constant 0 : index
    %0 = vector.load %arg3[%c0, %c0_0] : memref<8x256xf32, #tpu.memory_space<vmem>>, vector<8x256xf32>
    %c0_1 = arith.constant 0 : index
    %c0_2 = arith.constant 0 : index
    %1 = vector.load %arg0[%c0_1, %c0_2] : memref<8x1024xbf16, #tpu.memory_space<vmem>>, vector<8x1024xbf16>
    %c0_3 = arith.constant 0 : index
    %c0_4 = arith.constant 0 : index
    %2 = vector.load %arg1[%c0_3, %c0_4] : memref<1280x128xbf16, #tpu.memory_space<vmem>>, vector<1024x128xbf16>
    %cst = arith.constant dense<0.000000e+00> : vector<8x128xf32>
    %3 = tpu.matmul %1, %2, %cst {dimension_numbers = #tpu.dot_dimension_numbers<[1], [0], [0], [1], [0, 0, 1, 1], [], []>} : vector<8x1024xbf16>, vector<1024x128xbf16>, vector<8x128xf32> -> vector<8x128xf32>
    %4 = vector.extract_strided_slice %0 {offsets = [0, 0], sizes = [1, 128], strides = [1, 1]} : vector<8x256xf32> to vector<1x128xf32>
    %5 = vector.broadcast %4 : vector<1x128xf32> to vector<8x128xf32>
    %6 = arith.addf %3, %5 : vector<8x128xf32>
    %cst_5 = arith.constant 0.000000e+00 : f32
    %7 = vector.broadcast %cst_5 : f32 to vector<8x128xf32>
    %8 = arith.maximumf %6, %7 : vector<8x128xf32>
    %9 = tpu.iota {dimensions = array<i32: 0>} : vector<8x1xi32>
    %c2_i32 = arith.constant 2 : i32
    %10 = vector.broadcast %c2_i32 : i32 to vector<8x1xi32>
    %11 = arith.cmpi slt, %9, %10 : vector<8x1xi32>
    %12 = arith.extui %11 : vector<8x1xi1> to vector<8x1xi32>
    %13 = arith.sitofp %12 : vector<8x1xi32> to vector<8x1xf32>
    %14 = vector.broadcast %13 : vector<8x1xf32> to vector<8x128xf32>
    %15 = arith.mulf %8, %14 : vector<8x128xf32>
    %16 = arith.truncf %15 : vector<8x128xf32> to vector<8x128xbf16>
    %c0_6 = arith.constant 0 : index
    %c0_7 = arith.constant 0 : index
    %17 = vector.load %arg2[%c0_6, %c0_7] : memref<128x256xbf16, #tpu.memory_space<vmem>>, vector<128x256xbf16>
    %cst_8 = arith.constant dense<0.000000e+00> : vector<8x256xf32>
    %18 = tpu.matmul %16, %17, %cst_8 {dimension_numbers = #tpu.dot_dimension_numbers<[1], [0], [0], [1], [0, 0, 1, 1], [], []>} : vector<8x128xbf16>, vector<128x256xbf16>, vector<8x256xf32> -> vector<8x256xf32>
    %cst_9 = arith.constant dense<0.000000e+00> : vector<256xf32>
    %19 = vector.multi_reduction <add>, %18, %cst_9 [0] : vector<8x256xf32> to vector<256xf32>
    %20 = vector.shape_cast %19 : vector<256xf32> to vector<1x256xf32>
    %cst_10 = arith.constant 5.000000e-01 : f32
    %21 = vector.broadcast %cst_10 : f32 to vector<1x256xf32>
    %22 = arith.mulf %20, %21 : vector<1x256xf32>
    %23 = arith.mulf %18, %18 : vector<8x256xf32>
    %cst_11 = arith.constant dense<0.000000e+00> : vector<256xf32>
    %24 = vector.multi_reduction <add>, %23, %cst_11 [0] : vector<8x256xf32> to vector<256xf32>
    %25 = vector.shape_cast %24 : vector<256xf32> to vector<1x256xf32>
    %cst_12 = arith.constant 5.000000e-01 : f32
    %26 = vector.broadcast %cst_12 : f32 to vector<1x256xf32>
    %27 = arith.mulf %25, %26 : vector<1x256xf32>
    %28 = arith.mulf %22, %22 : vector<1x256xf32>
    %29 = arith.subf %27, %28 : vector<1x256xf32>
    %30 = vector.extract_strided_slice %0 {offsets = [1, 0], sizes = [1, 256], strides = [1, 1]} : vector<8x256xf32> to vector<1x256xf32>
    %cst_13 = arith.constant 9.99999974E-6 : f32
    %31 = vector.broadcast %cst_13 : f32 to vector<1x256xf32>
    %32 = arith.addf %29, %31 : vector<1x256xf32>
    %33 = math.rsqrt %32 : vector<1x256xf32>
    %34 = arith.mulf %30, %33 : vector<1x256xf32>
    %35 = vector.extract_strided_slice %0 {offsets = [2, 0], sizes = [1, 256], strides = [1, 1]} : vector<8x256xf32> to vector<1x256xf32>
    %36 = arith.mulf %22, %34 : vector<1x256xf32>
    %37 = arith.subf %35, %36 : vector<1x256xf32>
    %38 = vector.broadcast %34 : vector<1x256xf32> to vector<8x256xf32>
    %39 = arith.mulf %18, %38 : vector<8x256xf32>
    %40 = vector.broadcast %37 : vector<1x256xf32> to vector<8x256xf32>
    %41 = arith.addf %39, %40 : vector<8x256xf32>
    %cst_14 = arith.constant 0.000000e+00 : f32
    %42 = vector.broadcast %cst_14 : f32 to vector<8x256xf32>
    %43 = arith.maximumf %41, %42 : vector<8x256xf32>
    %44 = arith.truncf %43 : vector<8x256xf32> to vector<8x256xbf16>
    %c1024 = arith.constant 1024 : index
    %c0_15 = arith.constant 0 : index
    %45 = vector.load %arg1[%c1024, %c0_15] : memref<1280x128xbf16, #tpu.memory_space<vmem>>, vector<256x128xbf16>
    %cst_16 = arith.constant dense<0.000000e+00> : vector<8x128xf32>
    %46 = tpu.matmul %44, %45, %cst_16 {dimension_numbers = #tpu.dot_dimension_numbers<[1], [0], [0], [1], [0, 0, 1, 1], [], []>} : vector<8x256xbf16>, vector<256x128xbf16>, vector<8x128xf32> -> vector<8x128xf32>
    %47 = vector.extract_strided_slice %0 {offsets = [3, 0], sizes = [1, 128], strides = [1, 1]} : vector<8x256xf32> to vector<1x128xf32>
    %48 = vector.broadcast %47 : vector<1x128xf32> to vector<8x128xf32>
    %49 = arith.addf %46, %48 : vector<8x128xf32>
    %c0_17 = arith.constant 0 : index
    %c0_18 = arith.constant 0 : index
    %50 = vector.load %arg4[%c0_17, %c0_18] : memref<8x384xf32, #tpu.memory_space<vmem>>, vector<8x128xf32>
    tpu.vector_store %arg4[%c0_17, %c0_18], %49 {strides = array<i32>} : memref<8x384xf32, #tpu.memory_space<vmem>>, vector<8x128xf32>,
    %c0_19 = arith.constant 0 : index
    %c128 = arith.constant 128 : index
    %51 = vector.load %arg4[%c0_19, %c128] : memref<8x384xf32, #tpu.memory_space<vmem>>, vector<8x256xf32>
    tpu.vector_store %arg4[%c0_19, %c128], %43 {strides = array<i32>} : memref<8x384xf32, #tpu.memory_space<vmem>>, vector<8x256xf32>,
    return
  }
}

</mosaic_0001>

<llo_original>
// kernel: tpu_custom_call.1
$region0: #{tpu_custom_call.1}
  #allocation0 [shape = 'u32[]', space=smem, size = 0x4, offset = 0x4, fixed_abs, tag = 'smem constant byte address 0x4 - core index']
  #allocation1 [shape = 'u32[144,128]{1,0:T(1,128)}', space=vmem, size = 0x12000, scoped, tag = 'internal scratch']
  %s0 = inlined_call_operand.hbm [shape: bf16[8,1024], index: 0, kind: input, shape index: {}]
  %s1 = inlined_call_operand.hbm [shape: bf16[1280,128], index: 1, kind: input, shape index: {}]
  %s2 = inlined_call_operand.hbm [shape: bf16[128,256], index: 2, kind: input, shape index: {}]
  %s3 = inlined_call_operand.hbm [shape: f32[8,256], index: 3, kind: input, shape index: {}]
  %s4 = inlined_call_operand.hbm [shape: f32[8,384], index: 4, kind: output, shape index: {}]
  %s5 = sld [smem:[#allocation0]]
  $region42: #{tpu_custom_call.1} parent=0
    _
  %s7 = ssub.s32 1, %s5
  %s8 = scalar_select 0, %s7, %s5
  $region1: #{tpu_custom_call.1} parent=0
    #allocation2 [shape = 'u8[16384]{0}', space=vmem, size = 0x4000, scoped, tag = 'input window, operand 0, single buffered']
    #allocation3 [shape = 's32[1]{0}', space=sflag, size = 0x4, scoped, tag = 'scoped memory for tpu_custom_call.1']
    #allocation4 [shape = 's32[1]{0}', space=sflag, size = 0x4, scoped, tag = 'scoped memory for tpu_custom_call.1']
    #allocation5 [shape = 'u8[327680]{0}', space=vmem, size = 0x50000, scoped, tag = 'input window, operand 1, single buffered']
    #allocation6 [shape = 's32[1]{0}', space=sflag, size = 0x4, scoped, tag = 'scoped memory for tpu_custom_call.1']
    #allocation7 [shape = 'u8[65536]{0}', space=vmem, size = 0x10000, scoped, tag = 'input window, operand 2, single buffered']
    #allocation8 [shape = 'u8[8192]{0}', space=vmem, size = 0x2000, scoped, tag = 'input window, operand 3, single buffered']
    #allocation9 [shape = 's32[1]{0}', space=sflag, size = 0x4, scoped, tag = 'scoped memory for tpu_custom_call.1']
    #allocation10 [shape = 'u8[12288]{0}', space=vmem, size = 0x3000, scoped, tag = 'output window, operand 0, single buffered']
    %9 = vsyncpa [#allocation3], 0
    %10 = vsyncpa [#allocation6], 0
    %11 = vsyncpa [#allocation9], 0
    %12 = vsyncpa [#allocation4], 0
    // Predicated region
    $region2: #{tpu_custom_call.1} parent=1 // pred_check
      _
    $region3: #{tpu_custom_call.1} parent=1 // pred_check_branch
      %14 = sbr.rel (0) target = $region5
    $region4: #{tpu_custom_call.1} parent=1 // pred_region
      %s16 = ssub.s32 512, 512
      %17 = vsyncadd [#allocation3], %s16
      %s19 = sshll.u32 [#allocation2], 4
      %s20 = int_to_ptr.vmem [resolvable:$true] %s19
      %22 = dma.hbm_to_vmem [thread:$0]  %s0, 512, %s20, [#allocation3]
    $region5: #{tpu_custom_call.1} parent=1 // pred_fallthru
      _
    // Predicated region
    $region6: #{tpu_custom_call.1} parent=1 // pred_check
      _
    $region7: #{tpu_custom_call.1} parent=1 // pred_check_branch
      %24 = sbr.rel (0) target = $region9
    $region8: #{tpu_custom_call.1} parent=1 // pred_region
      %s26 = ssub.s32 10240, 10240
      %27 = vsyncadd [#allocation6], %s26
      %s28 = sshll.u32 [#allocation5], 4
      %s29 = int_to_ptr.vmem [resolvable:$true] %s28
      %34 = dma.hbm_to_vmem [thread:$0]  %s1, 10240, %s29, [#allocation6], 64, 64, 4
    $region9: #{tpu_custom_call.1} parent=1 // pred_fallthru
      _
    // Predicated region
    $region10: #{tpu_custom_call.1} parent=1 // pred_check
      _
    $region11: #{tpu_custom_call.1} parent=1 // pred_check_branch
      %36 = sbr.rel (0) target = $region13
    $region12: #{tpu_custom_call.1} parent=1 // pred_region
      %s38 = ssub.s32 2048, 2048
      %39 = vsyncadd [#allocation6], %s38
      %s40 = sshll.u32 [#allocation7], 4
      %s41 = int_to_ptr.vmem [resolvable:$true] %s40
      %46 = dma.hbm_to_vmem [thread:$0]  %s2, 2048, %s41, [#allocation6], 128, 128, 8
    $region13: #{tpu_custom_call.1} parent=1 // pred_fallthru
      _
    // Predicated region
    $region14: #{tpu_custom_call.1} parent=1 // pred_check
      _
    $region15: #{tpu_custom_call.1} parent=1 // pred_check_branch
      %48 = sbr.rel (0) target = $region17
    $region16: #{tpu_custom_call.1} parent=1 // pred_region
      %s50 = ssub.s32 256, 256
      %51 = vsyncadd [#allocation9], %s50
      %s53 = sshll.u32 [#allocation8], 4
      %s54 = int_to_ptr.vmem [resolvable:$true] %s53
      %56 = dma.hbm_to_vmem [thread:$0]  %s3, 256, %s54, [#allocation9]
    $region17: #{tpu_custom_call.1} parent=1 // pred_fallthru
      _
    // Predicated region
    $region18: #{tpu_custom_call.1} parent=1 // pred_check
      _
    $region19: #{tpu_custom_call.1} parent=1 // pred_check_branch
      %58 = sbr.rel (0) target = $region21
    $region20: #{tpu_custom_call.1} parent=1 // pred_region
      %59 = dma.done [#allocation3], 512
    $region21: #{tpu_custom_call.1} parent=1 // pred_fallthru
      _
    // Predicated region
    $region22: #{tpu_custom_call.1} parent=1 // pred_check
      _
    $region23: #{tpu_custom_call.1} parent=1 // pred_check_branch
      %61 = sbr.rel (0) target = $region25
    $region24: #{tpu_custom_call.1} parent=1 // pred_region
      %62 = dma.done [#allocation6], 10240
    $region25: #{tpu_custom_call.1} parent=1 // pred_fallthru
      _
    // Predicated region
    $region26: #{tpu_custom_call.1} parent=1 // pred_check
      _
    $region27: #{tpu_custom_call.1} parent=1 // pred_check_branch
      %64 = sbr.rel (0) target = $region29
    $region28: #{tpu_custom_call.1} parent=1 // pred_region
      %65 = dma.done [#allocation6], 2048
    $region29: #{tpu_custom_call.1} parent=1 // pred_fallthru
      _
    // Predicated region
    $region30: #{tpu_custom_call.1} parent=1 // pred_check
      _
    $region31: #{tpu_custom_call.1} parent=1 // pred_check_branch
      %67 = sbr.rel (0) target = $region33
    $region32: #{tpu_custom_call.1} parent=1 // pred_region
      %68 = dma.done [#allocation9], 256
    $region33: #{tpu_custom_call.1} parent=1 // pred_fallthru
      _
    %v70 = vld [vmem:[#allocation8] sm:$0xff]
    %v71 = vld [vmem:[#allocation8 + $0x8] sm:$0xff]
    %v72 = vld [vmem:[#allocation2] sm:$0xff]
    %v73 = vld [vmem:[#allocation2 + $0x8] sm:$0xff]
    %v74 = vld [vmem:[#allocation2 + $0x10] sm:$0xff]
    %v75 = vld [vmem:[#allocation2 + $0x18] sm:$0xff]
    %v76 = vld [vmem:[#allocation5] sm:$0xf]
    %v77 = vld [vmem:[#allocation5 + $0x4] sm:$0xf]
    %v78 = vld [vmem:[#allocation5 + $0x8] sm:$0xf]
    %v79 = vld [vmem:[#allocation5 + $0xc] sm:$0xf]
    %v80 = vld [vmem:[#allocation5 + $0x10] sm:$0xf]
    %v81 = vld [vmem:[#allocation5 + $0x14] sm:$0xf]
    %v82 = vld [vmem:[#allocation5 + $0x18] sm:$0xf]
    %v83 = vld [vmem:[#allocation5 + $0x1c] sm:$0xf]
    %v84 = vld [vmem:[#allocation5 + $0x20] sm:$0xf]
    %v85 = vld [vmem:[#allocation5 + $0x24] sm:$0xf]
    %v86 = vld [vmem:[#allocation5 + $0x28] sm:$0xf]
    %v87 = vld [vmem:[#allocation5 + $0x2c] sm:$0xf]
    %v88 = vld [vmem:[#allocation5 + $0x30] sm:$0xf]
    %v89 = vld [vmem:[#allocation5 + $0x34] sm:$0xf]
    %v90 = vld [vmem:[#allocation5 + $0x38] sm:$0xf]
    %v91 = vld [vmem:[#allocation5 + $0x3c] sm:$0xf]
    %v92 = vld [vmem:[#allocation5 + $0x40] sm:$0xf]
    %v93 = vld [vmem:[#allocation5 + $0x44] sm:$0xf]
    %v94 = vld [vmem:[#allocation5 + $0x48] sm:$0xf]
    %v95 = vld [vmem:[#allocation5 + $0x4c] sm:$0xf]
    %v96 = vld [vmem:[#allocation5 + $0x50] sm:$0xf]
    %v97 = vld [vmem:[#allocation5 + $0x54] sm:$0xf]
    %v98 = vld [vmem:[#allocation5 + $0x58] sm:$0xf]
    %v99 = vld [vmem:[#allocation5 + $0x5c] sm:$0xf]
    %v100 = vld [vmem:[#allocation5 + $0x60] sm:$0xf]
    %v101 = vld [vmem:[#allocation5 + $0x64] sm:$0xf]
    %v102 = vld [vmem:[#allocation5 + $0x68] sm:$0xf]
    %v103 = vld [vmem:[#allocation5 + $0x6c] sm:$0xf]
    %v104 = vld [vmem:[#allocation5 + $0x70] sm:$0xf]
    %v105 = vld [vmem:[#allocation5 + $0x74] sm:$0xf]
    %v106 = vld [vmem:[#allocation5 + $0x78] sm:$0xf]
    %v107 = vld [vmem:[#allocation5 + $0x7c] sm:$0xf]
    %v108 = vld [vmem:[#allocation5 + $0x80] sm:$0xf]
    %v109 = vld [vmem:[#allocation5 + $0x84] sm:$0xf]
    %v110 = vld [vmem:[#allocation5 + $0x88] sm:$0xf]
    %v111 = vld [vmem:[#allocation5 + $0x8c] sm:$0xf]
    %v112 = vld [vmem:[#allocation5 + $0x90] sm:$0xf]
    %v113 = vld [vmem:[#allocation5 + $0x94] sm:$0xf]
    %v114 = vld [vmem:[#allocation5 + $0x98] sm:$0xf]
    %v115 = vld [vmem:[#allocation5 + $0x9c] sm:$0xf]
    %v116 = vld [vmem:[#allocation5 + $0xa0] sm:$0xf]
    %v117 = vld [vmem:[#allocation5 + $0xa4] sm:$0xf]
    %v118 = vld [vmem:[#allocation5 + $0xa8] sm:$0xf]
    %v119 = vld [vmem:[#allocation5 + $0xac] sm:$0xf]
    %v120 = vld [vmem:[#allocation5 + $0xb0] sm:$0xf]
    %v121 = vld [vmem:[#allocation5 + $0xb4] sm:$0xf]
    %v122 = vld [vmem:[#allocation5 + $0xb8] sm:$0xf]
    %v123 = vld [vmem:[#allocation5 + $0xbc] sm:$0xf]
    %v124 = vld [vmem:[#allocation5 + $0xc0] sm:$0xf]
    %v125 = vld [vmem:[#allocation5 + $0xc4] sm:$0xf]
    %v126 = vld [vmem:[#allocation5 + $0xc8] sm:$0xf]
    %v127 = vld [vmem:[#allocation5 + $0xcc] sm:$0xf]
    %v128 = vld [vmem:[#allocation5 + $0xd0] sm:$0xf]
    %v129 = vld [vmem:[#allocation5 + $0xd4] sm:$0xf]
    %v130 = vld [vmem:[#allocation5 + $0xd8] sm:$0xf]
    %v131 = vld [vmem:[#allocation5 + $0xdc] sm:$0xf]
    %v132 = vld [vmem:[#allocation5 + $0xe0] sm:$0xf]
    %v133 = vld [vmem:[#allocation5 + $0xe4] sm:$0xf]
    %v134 = vld [vmem:[#allocation5 + $0xe8] sm:$0xf]
    %v135 = vld [vmem:[#allocation5 + $0xec] sm:$0xf]
    %v136 = vld [vmem:[#allocation5 + $0xf0] sm:$0xf]
    %v137 = vld [vmem:[#allocation5 + $0xf4] sm:$0xf]
    %v138 = vld [vmem:[#allocation5 + $0xf8] sm:$0xf]
    %v139 = vld [vmem:[#allocation5 + $0xfc] sm:$0xf]
    %v140 = vld [vmem:[#allocation5 + $0x100] sm:$0xf]
    %v141 = vld [vmem:[#allocation5 + $0x104] sm:$0xf]
    %v142 = vld [vmem:[#allocation5 + $0x108] sm:$0xf]
    %v143 = vld [vmem:[#allocation5 + $0x10c] sm:$0xf]
    %v144 = vld [vmem:[#allocation5 + $0x110] sm:$0xf]
    %v145 = vld [vmem:[#allocation5 + $0x114] sm:$0xf]
    %v146 = vld [vmem:[#allocation5 + $0x118] sm:$0xf]
    %v147 = vld [vmem:[#allocation5 + $0x11c] sm:$0xf]
    %v148 = vld [vmem:[#allocation5 + $0x120] sm:$0xf]
    %v149 = vld [vmem:[#allocation5 + $0x124] sm:$0xf]
    %v150 = vld [vmem:[#allocation5 + $0x128] sm:$0xf]
    %v151 = vld [vmem:[#allocation5 + $0x12c] sm:$0xf]
    %v152 = vld [vmem:[#allocation5 + $0x130] sm:$0xf]
    %v153 = vld [vmem:[#allocation5 + $0x134] sm:$0xf]
    %v154 = vld [vmem:[#allocation5 + $0x138] sm:$0xf]
    %v155 = vld [vmem:[#allocation5 + $0x13c] sm:$0xf]
    %v156 = vld [vmem:[#allocation5 + $0x140] sm:$0xf]
    %v157 = vld [vmem:[#allocation5 + $0x144] sm:$0xf]
    %v158 = vld [vmem:[#allocation5 + $0x148] sm:$0xf]
    %v159 = vld [vmem:[#allocation5 + $0x14c] sm:$0xf]
    %v160 = vld [vmem:[#allocation5 + $0x150] sm:$0xf]
    %v161 = vld [vmem:[#allocation5 + $0x154] sm:$0xf]
    %v162 = vld [vmem:[#allocation5 + $0x158] sm:$0xf]
    %v163 = vld [vmem:[#allocation5 + $0x15c] sm:$0xf]
    %v164 = vld [vmem:[#allocation5 + $0x160] sm:$0xf]
    %v165 = vld [vmem:[#allocation5 + $0x164] sm:$0xf]
    %v166 = vld [vmem:[#allocation5 + $0x168] sm:$0xf]
    %v167 = vld [vmem:[#allocation5 + $0x16c] sm:$0xf]
    %v168 = vld [vmem:[#allocation5 + $0x170] sm:$0xf]
    %v169 = vld [vmem:[#allocation5 + $0x174] sm:$0xf]
    %v170 = vld [vmem:[#allocation5 + $0x178] sm:$0xf]
    %v171 = vld [vmem:[#allocation5 + $0x17c] sm:$0xf]
    %v172 = vld [vmem:[#allocation5 + $0x180] sm:$0xf]
    %v173 = vld [vmem:[#allocation5 + $0x184] sm:$0xf]
    %v174 = vld [vmem:[#allocation5 + $0x188] sm:$0xf]
    %v175 = vld [vmem:[#allocation5 + $0x18c] sm:$0xf]
    %v176 = vld [vmem:[#allocation5 + $0x190] sm:$0xf]
    %v177 = vld [vmem:[#allocation5 + $0x194] sm:$0xf]
    %v178 = vld [vmem:[#allocation5 + $0x198] sm:$0xf]
    %v179 = vld [vmem:[#allocation5 + $0x19c] sm:$0xf]
    %v180 = vld [vmem:[#allocation5 + $0x1a0] sm:$0xf]
    %v181 = vld [vmem:[#allocation5 + $0x1a4] sm:$0xf]
    %v182 = vld [vmem:[#allocation5 + $0x1a8] sm:$0xf]
    %v183 = vld [vmem:[#allocation5 + $0x1ac] sm:$0xf]
    %v184 = vld [vmem:[#allocation5 + $0x1b0] sm:$0xf]
    %v185 = vld [vmem:[#allocation5 + $0x1b4] sm:$0xf]
    %v186 = vld [vmem:[#allocation5 + $0x1b8] sm:$0xf]
    %v187 = vld [vmem:[#allocation5 + $0x1bc] sm:$0xf]
    %v188 = vld [vmem:[#allocation5 + $0x1c0] sm:$0xf]
    %v189 = vld [vmem:[#allocation5 + $0x1c4] sm:$0xf]
    %v190 = vld [vmem:[#allocation5 + $0x1c8] sm:$0xf]
    %v191 = vld [vmem:[#allocation5 + $0x1cc] sm:$0xf]
    %v192 = vld [vmem:[#allocation5 + $0x1d0] sm:$0xf]
    %v193 = vld [vmem:[#allocation5 + $0x1d4] sm:$0xf]
    %v194 = vld [vmem:[#allocation5 + $0x1d8] sm:$0xf]
    %v195 = vld [vmem:[#allocation5 + $0x1dc] sm:$0xf]
    %v196 = vld [vmem:[#allocation5 + $0x1e0] sm:$0xf]
    %v197 = vld [vmem:[#allocation5 + $0x1e4] sm:$0xf]
    %v198 = vld [vmem:[#allocation5 + $0x1e8] sm:$0xf]
    %v199 = vld [vmem:[#allocation5 + $0x1ec] sm:$0xf]
    %v200 = vld [vmem:[#allocation5 + $0x1f0] sm:$0xf]
    %v201 = vld [vmem:[#allocation5 + $0x1f4] sm:$0xf]
    %v202 = vld [vmem:[#allocation5 + $0x1f8] sm:$0xf]
    %v203 = vld [vmem:[#allocation5 + $0x1fc] sm:$0xf]
    %v204 = vlaneseq
    %v205 = vshrl.u32 %v204, 7
    %v206 = vsub.s32 0, %v205
    %v207 = vrot.slane %v70, %v206
    %v212 = vunpack.c.l.b16 %v72
    %v213 = vunpack.c.h.b16 %v72
    %v214 = vunpack.c.l.b16 %v73
    %v215 = vunpack.c.h.b16 %v73
    %v216 = vunpack.c.l.b16 %v74
    %v217 = vunpack.c.h.b16 %v74
    %v218 = vunpack.c.l.b16 %v75
    %v219 = vunpack.c.h.b16 %v75
    %v220 = vpack.c.b16 %v212, %v212
    %v221 = vpack.c.b16 %v213, %v213
    %v222 = vpack.c.b16 %v214, %v214
    %v223 = vpack.c.b16 %v215, %v215
    %v224 = vpack.c.b16 %v216, %v216
    %v225 = vpack.c.b16 %v217, %v217
    %v226 = vpack.c.b16 %v218, %v218
    %v227 = vpack.c.b16 %v219, %v219
    %v364 = vunpack.c.l.b16 %v76
    %v365 = vunpack.c.l.b16 %v77
    %v366 = vunpack.c.l.b16 %v78
    %v367 = vunpack.c.l.b16 %v79
    %v368 = vunpack.c.l.b16 %v80
    %v369 = vunpack.c.l.b16 %v81
    %v370 = vunpack.c.l.b16 %v82
    %v371 = vunpack.c.l.b16 %v83
    %v372 = vunpack.c.l.b16 %v84
    %v373 = vunpack.c.l.b16 %v85
    %v374 = vunpack.c.l.b16 %v86
    %v375 = vunpack.c.l.b16 %v87
    %v376 = vunpack.c.l.b16 %v88
    %v377 = vunpack.c.l.b16 %v89
    %v378 = vunpack.c.l.b16 %v90
    %v379 = vunpack.c.l.b16 %v91
    %v380 = vunpack.c.l.b16 %v92
    %v381 = vunpack.c.l.b16 %v93
    %v382 = vunpack.c.l.b16 %v94
    %v383 = vunpack.c.l.b16 %v95
    %v384 = vunpack.c.l.b16 %v96
    %v385 = vunpack.c.l.b16 %v97
    %v386 = vunpack.c.l.b16 %v98
    %v387 = vunpack.c.l.b16 %v99
    %v388 = vunpack.c.l.b16 %v100
    %v389 = vunpack.c.l.b16 %v101
    %v390 = vunpack.c.l.b16 %v102
    %v391 = vunpack.c.l.b16 %v103
    %v392 = vunpack.c.l.b16 %v104
    %v393 = vunpack.c.l.b16 %v105
    %v394 = vunpack.c.l.b16 %v106
    %v395 = vunpack.c.l.b16 %v107
    %v396 = vunpack.c.l.b16 %v108
    %v397 = vunpack.c.l.b16 %v109
    %v398 = vunpack.c.l.b16 %v110
    %v399 = vunpack.c.l.b16 %v111
    %v400 = vunpack.c.l.b16 %v112
    %v401 = vunpack.c.l.b16 %v113
    %v402 = vunpack.c.l.b16 %v114
    %v403 = vunpack.c.l.b16 %v115
    %v404 = vunpack.c.l.b16 %v116
    %v405 = vunpack.c.l.b16 %v117
    %v406 = vunpack.c.l.b16 %v118
    %v407 = vunpack.c.l.b16 %v119
    %v408 = vunpack.c.l.b16 %v120
    %v409 = vunpack.c.l.b16 %v121
    %v410 = vunpack.c.l.b16 %v122
    %v411 = vunpack.c.l.b16 %v123
    %v412 = vunpack.c.l.b16 %v124
    %v413 = vunpack.c.l.b16 %v125
    %v414 = vunpack.c.l.b16 %v126
    %v415 = vunpack.c.l.b16 %v127
    %v416 = vunpack.c.l.b16 %v128
    %v417 = vunpack.c.l.b16 %v129
    %v418 = vunpack.c.l.b16 %v130
    %v419 = vunpack.c.l.b16 %v131
    %v420 = vunpack.c.l.b16 %v132
    %v421 = vunpack.c.l.b16 %v133
    %v422 = vunpack.c.l.b16 %v134
    %v423 = vunpack.c.l.b16 %v135
    %v424 = vunpack.c.l.b16 %v136
    %v425 = vunpack.c.l.b16 %v137
    %v426 = vunpack.c.l.b16 %v138
    %v427 = vunpack.c.l.b16 %v139
    %v428 = vunpack.c.l.b16 %v140
    %v429 = vunpack.c.l.b16 %v141
    %v430 = vunpack.c.l.b16 %v142
    %v431 = vunpack.c.l.b16 %v143
    %v432 = vunpack.c.l.b16 %v144
    %v433 = vunpack.c.l.b16 %v145
    %v434 = vunpack.c.l.b16 %v146
    %v435 = vunpack.c.l.b16 %v147
    %v436 = vunpack.c.l.b16 %v148
    %v437 = vunpack.c.l.b16 %v149
    %v438 = vunpack.c.l.b16 %v150
    %v439 = vunpack.c.l.b16 %v151
    %v440 = vunpack.c.l.b16 %v152
    %v441 = vunpack.c.l.b16 %v153
    %v442 = vunpack.c.l.b16 %v154
    %v443 = vunpack.c.l.b16 %v155
    %v444 = vunpack.c.l.b16 %v156
    %v445 = vunpack.c.l.b16 %v157
    %v446 = vunpack.c.l.b16 %v158
    %v447 = vunpack.c.l.b16 %v159
    %v448 = vunpack.c.l.b16 %v160
    %v449 = vunpack.c.l.b16 %v161
    %v450 = vunpack.c.l.b16 %v162
    %v451 = vunpack.c.l.b16 %v163
    %v452 = vunpack.c.l.b16 %v164
    %v453 = vunpack.c.l.b16 %v165
    %v454 = vunpack.c.l.b16 %v166
    %v455 = vunpack.c.l.b16 %v167
    %v456 = vunpack.c.l.b16 %v168
    %v457 = vunpack.c.l.b16 %v169
    %v458 = vunpack.c.l.b16 %v170
    %v459 = vunpack.c.l.b16 %v171
    %v460 = vunpack.c.l.b16 %v172
    %v461 = vunpack.c.l.b16 %v173
    %v462 = vunpack.c.l.b16 %v174
    %v463 = vunpack.c.l.b16 %v175
    %v464 = vunpack.c.l.b16 %v176
    %v465 = vunpack.c.l.b16 %v177
    %v466 = vunpack.c.l.b16 %v178
    %v467 = vunpack.c.l.b16 %v179
    %v468 = vunpack.c.l.b16 %v180
    %v469 = vunpack.c.l.b16 %v181
    %v470 = vunpack.c.l.b16 %v182
    %v471 = vunpack.c.l.b16 %v183
    %v472 = vunpack.c.l.b16 %v184
    %v473 = vunpack.c.l.b16 %v185
    %v474 = vunpack.c.l.b16 %v186
    %v475 = vunpack.c.l.b16 %v187
    %v476 = vunpack.c.l.b16 %v188
    %v477 = vunpack.c.l.b16 %v189
    %v478 = vunpack.c.l.b16 %v190
    %v479 = vunpack.c.l.b16 %v191
    %v480 = vunpack.c.l.b16 %v192
    %v481 = vunpack.c.l.b16 %v193
    %v482 = vunpack.c.l.b16 %v194
    %v483 = vunpack.c.l.b16 %v195
    %v484 = vunpack.c.l.b16 %v196
    %v485 = vunpack.c.l.b16 %v197
    %v486 = vunpack.c.l.b16 %v198
    %v487 = vunpack.c.l.b16 %v199
    %v488 = vunpack.c.l.b16 %v200
    %v489 = vunpack.c.l.b16 %v201
    %v490 = vunpack.c.l.b16 %v202
    %v491 = vunpack.c.l.b16 %v203
    %v492 = vpack.c.b16 %v365, %v364
    %v493 = vpack.c.b16 %v367, %v366
    %v494 = vpack.c.b16 %v369, %v368
    %v495 = vpack.c.b16 %v371, %v370
    %v496 = vpack.c.b16 %v373, %v372
    %v497 = vpack.c.b16 %v375, %v374
    %v498 = vpack.c.b16 %v377, %v376
    %v499 = vpack.c.b16 %v379, %v378
    %v500 = vpack.c.b16 %v381, %v380
    %v501 = vpack.c.b16 %v383, %v382
    %v502 = vpack.c.b16 %v385, %v384
    %v503 = vpack.c.b16 %v387, %v386
    %v504 = vpack.c.b16 %v389, %v388
    %v505 = vpack.c.b16 %v391, %v390
    %v506 = vpack.c.b16 %v393, %v392
    %v507 = vpack.c.b16 %v395, %v394
    %v508 = vpack.c.b16 %v397, %v396
    %v509 = vpack.c.b16 %v399, %v398
    %v510 = vpack.c.b16 %v401, %v400
    %v511 = vpack.c.b16 %v403, %v402
    %v512 = vpack.c.b16 %v405, %v404
    %v513 = vpack.c.b16 %v407, %v406
    %v514 = vpack.c.b16 %v409, %v408
    %v515 = vpack.c.b16 %v411, %v410
    %v516 = vpack.c.b16 %v413, %v412
    %v517 = vpack.c.b16 %v415, %v414
    %v518 = vpack.c.b16 %v417, %v416
    %v519 = vpack.c.b16 %v419, %v418
    %v520 = vpack.c.b16 %v421, %v420
    %v521 = vpack.c.b16 %v423, %v422
    %v522 = vpack.c.b16 %v425, %v424
    %v523 = vpack.c.b16 %v427, %v426
    %v524 = vpack.c.b16 %v429, %v428
    %v525 = vpack.c.b16 %v431, %v430
    %v526 = vpack.c.b16 %v433, %v432
    %v527 = vpack.c.b16 %v435, %v434
    %v528 = vpack.c.b16 %v437, %v436
    %v529 = vpack.c.b16 %v439, %v438
    %v530 = vpack.c.b16 %v441, %v440
    %v531 = vpack.c.b16 %v443, %v442
    %v532 = vpack.c.b16 %v445, %v444
    %v533 = vpack.c.b16 %v447, %v446
    %v534 = vpack.c.b16 %v449, %v448
    %v535 = vpack.c.b16 %v451, %v450
    %v536 = vpack.c.b16 %v453, %v452
    %v537 = vpack.c.b16 %v455, %v454
    %v538 = vpack.c.b16 %v457, %v456
    %v539 = vpack.c.b16 %v459, %v458
    %v540 = vpack.c.b16 %v461, %v460
    %v541 = vpack.c.b16 %v463, %v462
    %v542 = vpack.c.b16 %v465, %v464
    %v543 = vpack.c.b16 %v467, %v466
    %v544 = vpack.c.b16 %v469, %v468
    %v545 = vpack.c.b16 %v471, %v470
    %v546 = vpack.c.b16 %v473, %v472
    %v547 = vpack.c.b16 %v475, %v474
    %v548 = vpack.c.b16 %v477, %v476
    %v549 = vpack.c.b16 %v479, %v478
    %v550 = vpack.c.b16 %v481, %v480
    %v551 = vpack.c.b16 %v483, %v482
    %v552 = vpack.c.b16 %v485, %v484
    %v553 = vpack.c.b16 %v487, %v486
    %v554 = vpack.c.b16 %v489, %v488
    %v555 = vpack.c.b16 %v491, %v490
    %620 = vmatprep.subr.bf16.mxu0 0
    %621 = vmatpush1.bf16.msra.mxu0 %v499
    %622 = vmatprep.subr.bf16.mxu0 0
    %623 = vmatpush1.bf16.msra.mxu0 %v498
    %624 = vmatprep.subr.bf16.mxu0 0
    %625 = vmatpush1.bf16.msra.mxu0 %v497
    %626 = vmatprep.subr.bf16.mxu0 0
    %627 = vmatpush1.bf16.msra.mxu0 %v496
    %628 = vmatprep.subr.bf16.mxu0 0
    %629 = vmatpush1.bf16.msra.mxu0 %v495
    %630 = vmatprep.subr.bf16.mxu0 0
    %631 = vmatpush1.bf16.msra.mxu0 %v494
    %632 = vmatprep.subr.bf16.mxu0 0
    %633 = vmatpush1.bf16.msra.mxu0 %v493
    %634 = vmatprep.subr.bf16.mxu0 0
    %635 = vmatpush1.bf16.msra.mxu0 %v492
    %636 = vmatprep.subr.bf16.mxu0 0
    %637 = vmatpush2.bf16.msra.mxu0 %v507
    %638 = vmatprep.subr.bf16.mxu0 0
    %639 = vmatpush2.bf16.msra.mxu0 %v506
    %640 = vmatprep.subr.bf16.mxu0 0
    %641 = vmatpush2.bf16.msra.mxu0 %v505
    %642 = vmatprep.subr.bf16.mxu0 0
    %643 = vmatpush2.bf16.msra.mxu0 %v504
    %644 = vmatprep.subr.bf16.mxu0 0
    %645 = vmatpush2.bf16.msra.mxu0 %v503
    %646 = vmatprep.subr.bf16.mxu0 0
    %647 = vmatpush2.bf16.msra.mxu0 %v502
    %648 = vmatprep.subr.bf16.mxu0 0
    %649 = vmatpush2.bf16.msra.mxu0 %v501
    %650 = vmatprep.subr.bf16.mxu0 0
    %651 = vmatpush2.bf16.msra.mxu0 %v500
    %652 = vmatprep.mubr.bf16.mxu0 %v221
    %653 = vmatmul.mubr.bf16.gmra.mxu0 %v220
    %v654 = vpop.f32.mrf.mxu0
    %v655 = vadd.f32 %v207, %v654
    %v656 = vpop.f32.mrf.mxu0
    %v657 = vpop.f32.mrf.mxu0
    %v658 = vpop.f32.mrf.mxu0
    %659 = vdwg.mxu0
    %660 = vmatprep.subr.bf16.mxu0 0
    %661 = vmatpush1.bf16.msra.mxu0 %v515
    %662 = vmatprep.subr.bf16.mxu0 0
    %663 = vmatpush1.bf16.msra.mxu0 %v514
    %664 = vmatprep.subr.bf16.mxu0 0
    %665 = vmatpush1.bf16.msra.mxu0 %v513
    %666 = vmatprep.subr.bf16.mxu0 0
    %667 = vmatpush1.bf16.msra.mxu0 %v512
    %668 = vmatprep.subr.bf16.mxu0 0
    %669 = vmatpush1.bf16.msra.mxu0 %v511
    %670 = vmatprep.subr.bf16.mxu0 0
    %671 = vmatpush1.bf16.msra.mxu0 %v510
    %672 = vmatprep.subr.bf16.mxu0 0
    %673 = vmatpush1.bf16.msra.mxu0 %v509
    %674 = vmatprep.subr.bf16.mxu0 0
    %675 = vmatpush1.bf16.msra.mxu0 %v508
    %676 = vmatprep.subr.bf16.mxu0 0
    %677 = vmatpush2.bf16.msra.mxu0 %v523
    %678 = vmatprep.subr.bf16.mxu0 0
    %679 = vmatpush2.bf16.msra.mxu0 %v522
    %680 = vmatprep.subr.bf16.mxu0 0
    %681 = vmatpush2.bf16.msra.mxu0 %v521
    %682 = vmatprep.subr.bf16.mxu0 0
    %683 = vmatpush2.bf16.msra.mxu0 %v520
    %684 = vmatprep.subr.bf16.mxu0 0
    %685 = vmatpush2.bf16.msra.mxu0 %v519
    %686 = vmatprep.subr.bf16.mxu0 0
    %687 = vmatpush2.bf16.msra.mxu0 %v518
    %688 = vmatprep.subr.bf16.mxu0 0
    %689 = vmatpush2.bf16.msra.mxu0 %v517
    %690 = vmatprep.subr.bf16.mxu0 0
    %691 = vmatpush2.bf16.msra.mxu0 %v516
    %692 = vmatprep.mubr.bf16.mxu0 %v223
    %693 = vmatmul.mubr.bf16.gmra.mxu0 %v222
    %v694 = vpop.f32.mrf.mxu0
    %v695 = vadd.f32 %v655, %v694
    %v696 = vpop.f32.mrf.mxu0
    %v697 = vpop.f32.mrf.mxu0
    %v698 = vpop.f32.mrf.mxu0
    %699 = vdwg.mxu0
    %700 = vmatprep.subr.bf16.mxu0 0
    %701 = vmatpush1.bf16.msra.mxu0 %v531
    %702 = vmatprep.subr.bf16.mxu0 0
    %703 = vmatpush1.bf16.msra.mxu0 %v530
    %704 = vmatprep.subr.bf16.mxu0 0
    %705 = vmatpush1.bf16.msra.mxu0 %v529
    %706 = vmatprep.subr.bf16.mxu0 0
    %707 = vmatpush1.bf16.msra.mxu0 %v528
    %708 = vmatprep.subr.bf16.mxu0 0
    %709 = vmatpush1.bf16.msra.mxu0 %v527
    %710 = vmatprep.subr.bf16.mxu0 0
    %711 = vmatpush1.bf16.msra.mxu0 %v526
    %712 = vmatprep.subr.bf16.mxu0 0
    %713 = vmatpush1.bf16.msra.mxu0 %v525
    %714 = vmatprep.subr.bf16.mxu0 0
    %715 = vmatpush1.bf16.msra.mxu0 %v524
    %716 = vmatprep.subr.bf16.mxu0 0
    %717 = vmatpush2.bf16.msra.mxu0 %v539
    %718 = vmatprep.subr.bf16.mxu0 0
    %719 = vmatpush2.bf16.msra.mxu0 %v538
    %720 = vmatprep.subr.bf16.mxu0 0
    %721 = vmatpush2.bf16.msra.mxu0 %v537
    %722 = vmatprep.subr.bf16.mxu0 0
    %723 = vmatpush2.bf16.msra.mxu0 %v536
    %724 = vmatprep.subr.bf16.mxu0 0
    %725 = vmatpush2.bf16.msra.mxu0 %v535
    %726 = vmatprep.subr.bf16.mxu0 0
    %727 = vmatpush2.bf16.msra.mxu0 %v534
    %728 = vmatprep.subr.bf16.mxu0 0
    %729 = vmatpush2.bf16.msra.mxu0 %v533
    %730 = vmatprep.subr.bf16.mxu0 0
    %731 = vmatpush2.bf16.msra.mxu0 %v532
    %732 = vmatprep.mubr.bf16.mxu0 %v225
    %733 = vmatmul.mubr.bf16.gmra.mxu0 %v224
    %v734 = vpop.f32.mrf.mxu0
    %v735 = vadd.f32 %v695, %v734
    %v736 = vpop.f32.mrf.mxu0
    %v737 = vpop.f32.mrf.mxu0
    %v738 = vpop.f32.mrf.mxu0
    %739 = vdwg.mxu0
    %740 = vmatprep.subr.bf16.mxu0 0
    %741 = vmatpush1.bf16.msra.mxu0 %v547
    %742 = vmatprep.subr.bf16.mxu0 0
    %743 = vmatpush1.bf16.msra.mxu0 %v546
    %744 = vmatprep.subr.bf16.mxu0 0
    %745 = vmatpush1.bf16.msra.mxu0 %v545
    %746 = vmatprep.subr.bf16.mxu0 0
    %747 = vmatpush1.bf16.msra.mxu0 %v544
    %748 = vmatprep.subr.bf16.mxu0 0
    %749 = vmatpush1.bf16.msra.mxu0 %v543
    %750 = vmatprep.subr.bf16.mxu0 0
    %751 = vmatpush1.bf16.msra.mxu0 %v542
    %752 = vmatprep.subr.bf16.mxu0 0
    %753 = vmatpush1.bf16.msra.mxu0 %v541
    %754 = vmatprep.subr.bf16.mxu0 0
    %755 = vmatpush1.bf16.msra.mxu0 %v540
    %756 = vmatprep.subr.bf16.mxu0 0
    %757 = vmatpush2.bf16.msra.mxu0 %v555
    %758 = vmatprep.subr.bf16.mxu0 0
    %759 = vmatpush2.bf16.msra.mxu0 %v554
    %760 = vmatprep.subr.bf16.mxu0 0
    %761 = vmatpush2.bf16.msra.mxu0 %v553
    %762 = vmatprep.subr.bf16.mxu0 0
    %763 = vmatpush2.bf16.msra.mxu0 %v552
    %764 = vmatprep.subr.bf16.mxu0 0
    %765 = vmatpush2.bf16.msra.mxu0 %v551
    %766 = vmatprep.subr.bf16.mxu0 0
    %767 = vmatpush2.bf16.msra.mxu0 %v550
    %768 = vmatprep.subr.bf16.mxu0 0
    %769 = vmatpush2.bf16.msra.mxu0 %v549
    %770 = vmatprep.subr.bf16.mxu0 0
    %771 = vmatpush2.bf16.msra.mxu0 %v548
    %772 = vmatprep.mubr.bf16.mxu0 %v227
    %773 = vmatmul.mubr.bf16.gmra.mxu0 %v226
    %v774 = vpop.f32.mrf.mxu0
    %v775 = vadd.f32 %v735, %v774
    %v776 = vpop.f32.mrf.mxu0
    %v777 = vpop.f32.mrf.mxu0
    %v778 = vpop.f32.mrf.mxu0
    %779 = vdwg.mxu0
    %v780 = vmax.f32 %v775, 0.0
    %v781 = vlaneseq
    %v782 = vshrl.u32 %v781, 7
    %vm783 = vcmp.lt.s32.totalorder %v782, 2
    %v784 = vsel %vm783, 1, 0
    %v785 = vcvt.s32.f32 %v784
    %v786 = vmul.f32 %v780, %v785
    %v787 = vpack.c.bf16 %v786, %v786
    %v788 = vld [vmem:[#allocation7] sm:$0xff]
    %v789 = vld [vmem:[#allocation7 + $0x8] sm:$0xff]
    %v790 = vld [vmem:[#allocation7 + $0x10] sm:$0xff]
    %v791 = vld [vmem:[#allocation7 + $0x18] sm:$0xff]
    %v792 = vld [vmem:[#allocation7 + $0x20] sm:$0xff]
    %v793 = vld [vmem:[#allocation7 + $0x28] sm:$0xff]
    %v794 = vld [vmem:[#allocation7 + $0x30] sm:$0xff]
    %v795 = vld [vmem:[#allocation7 + $0x38] sm:$0xff]
    %v796 = vld [vmem:[#allocation7 + $0x40] sm:$0xff]
    %v797 = vld [vmem:[#allocation7 + $0x48] sm:$0xff]
    %v798 = vld [vmem:[#allocation7 + $0x50] sm:$0xff]
    %v799 = vld [vmem:[#allocation7 + $0x58] sm:$0xff]
    %v800 = vld [vmem:[#allocation7 + $0x60] sm:$0xff]
    %v801 = vld [vmem:[#allocation7 + $0x68] sm:$0xff]
    %v802 = vld [vmem:[#allocation7 + $0x70] sm:$0xff]
    %v803 = vld [vmem:[#allocation7 + $0x78] sm:$0xff]
    %v820 = vunpack.c.l.b16 %v788
    %v821 = vunpack.c.h.b16 %v788
    %v822 = vunpack.c.l.b16 %v789
    %v823 = vunpack.c.h.b16 %v789
    %v824 = vunpack.c.l.b16 %v790
    %v825 = vunpack.c.h.b16 %v790
    %v826 = vunpack.c.l.b16 %v791
    %v827 = vunpack.c.h.b16 %v791
    %v828 = vunpack.c.l.b16 %v792
    %v829 = vunpack.c.h.b16 %v792
    %v830 = vunpack.c.l.b16 %v793
    %v831 = vunpack.c.h.b16 %v793
    %v832 = vunpack.c.l.b16 %v794
    %v833 = vunpack.c.h.b16 %v794
    %v834 = vunpack.c.l.b16 %v795
    %v835 = vunpack.c.h.b16 %v795
    %v836 = vunpack.c.l.b16 %v796
    %v837 = vunpack.c.h.b16 %v796
    %v838 = vunpack.c.l.b16 %v797
    %v839 = vunpack.c.h.b16 %v797
    %v840 = vunpack.c.l.b16 %v798
    %v841 = vunpack.c.h.b16 %v798
    %v842 = vunpack.c.l.b16 %v799
    %v843 = vunpack.c.h.b16 %v799
    %v844 = vunpack.c.l.b16 %v800
    %v845 = vunpack.c.h.b16 %v800
    %v846 = vunpack.c.l.b16 %v801
    %v847 = vunpack.c.h.b16 %v801
    %v848 = vunpack.c.l.b16 %v802
    %v849 = vunpack.c.h.b16 %v802
    %v850 = vunpack.c.l.b16 %v803
    %v851 = vunpack.c.h.b16 %v803
    %v852 = vpack.c.b16 %v822, %v820
    %v853 = vpack.c.b16 %v823, %v821
    %v854 = vpack.c.b16 %v826, %v824
    %v855 = vpack.c.b16 %v827, %v825
    %v856 = vpack.c.b16 %v830, %v828
    %v857 = vpack.c.b16 %v831, %v829
    %v858 = vpack.c.b16 %v834, %v832
    %v859 = vpack.c.b16 %v835, %v833
    %v860 = vpack.c.b16 %v838, %v836
    %v861 = vpack.c.b16 %v839, %v837
    %v862 = vpack.c.b16 %v842, %v840
    %v863 = vpack.c.b16 %v843, %v841
    %v864 = vpack.c.b16 %v846, %v844
    %v865 = vpack.c.b16 %v847, %v845
    %v866 = vpack.c.b16 %v850, %v848
    %v867 = vpack.c.b16 %v851, %v849
    %884 = vmatprep.subr.bf16.mxu0 %v867
    %885 = vmatpush1.bf16.msra.mxu0 %v866
    %886 = vmatprep.subr.bf16.mxu0 %v865
    %887 = vmatpush1.bf16.msra.mxu0 %v864
    %888 = vmatprep.subr.bf16.mxu0 %v863
    %889 = vmatpush1.bf16.msra.mxu0 %v862
    %890 = vmatprep.subr.bf16.mxu0 %v861
    %891 = vmatpush1.bf16.msra.mxu0 %v860
    %892 = vmatprep.subr.bf16.mxu0 %v859
    %893 = vmatpush1.bf16.msra.mxu0 %v858
    %894 = vmatprep.subr.bf16.mxu0 %v857
    %895 = vmatpush1.bf16.msra.mxu0 %v856
    %896 = vmatprep.subr.bf16.mxu0 %v855
    %897 = vmatpush1.bf16.msra.mxu0 %v854
    %898 = vmatprep.subr.bf16.mxu0 %v853
    %899 = vmatpush1.bf16.msra.mxu0 %v852
    %900 = vmatprep.subr.bf16.mxu0 0
    %901 = vmatpush2.bf16.msra.mxu0 0
    %902 = vmatprep.subr.bf16.mxu0 0
    %903 = vmatpush2.bf16.msra.mxu0 0
    %904 = vmatprep.subr.bf16.mxu0 0
    %905 = vmatpush2.bf16.msra.mxu0 0
    %906 = vmatprep.subr.bf16.mxu0 0
    %907 = vmatpush2.bf16.msra.mxu0 0
    %908 = vmatprep.subr.bf16.mxu0 0
    %909 = vmatpush2.bf16.msra.mxu0 0
    %910 = vmatprep.subr.bf16.mxu0 0
    %911 = vmatpush2.bf16.msra.mxu0 0
    %912 = vmatprep.subr.bf16.mxu0 0
    %913 = vmatpush2.bf16.msra.mxu0 0
    %914 = vmatprep.subr.bf16.mxu0 0
    %915 = vmatpush2.bf16.msra.mxu0 0
    %916 = vmatprep.mubr.bf16.mxu0 0
    %917 = vmatmul.mubr.bf16.gmra.mxu0 %v787
    %v918 = vpop.f32.mrf.mxu0
    %v919 = vadd.f32 0.0, %v918
    %v920 = vpop.f32.mrf.mxu0
    %v921 = vadd.f32 0.0, %v920
    %v922 = vpop.f32.mrf.mxu0
    %v923 = vpop.f32.mrf.mxu0
    %924 = vdwg.mxu0
    %v925 = vrot.slane %v919, 4
    %v926 = vadd.f32 %v919, %v925
    %v927 = vrot.slane %v926, 2
    %v928 = vadd.f32 %v926, %v927
    %v929 = vrot.slane %v928, 1
    %v930 = vadd.f32 %v928, %v929
    %v931 = vrot.slane %v921, 4
    %v932 = vadd.f32 %v921, %v931
    %v933 = vrot.slane %v932, 2
    %v934 = vadd.f32 %v932, %v933
    %v935 = vrot.slane %v934, 1
    %v936 = vadd.f32 %v934, %v935
    %v937 = vmul.f32 %v930, 0.5
    %v938 = vmul.f32 %v936, 0.5
    %v939 = vmul.f32 %v919, %v919
    %v940 = vmul.f32 %v921, %v921
    %v941 = vrot.slane %v939, 4
    %v942 = vadd.f32 %v939, %v941
    %v943 = vrot.slane %v942, 2
    %v944 = vadd.f32 %v942, %v943
    %v945 = vrot.slane %v944, 1
    %v946 = vadd.f32 %v944, %v945
    %v947 = vrot.slane %v940, 4
    %v948 = vadd.f32 %v940, %v947
    %v949 = vrot.slane %v948, 2
    %v950 = vadd.f32 %v948, %v949
    %v951 = vrot.slane %v950, 1
    %v952 = vadd.f32 %v950, %v951
    %v953 = vmul.f32 %v946, 0.5
    %v954 = vmul.f32 %v952, 0.5
    %v955 = vmul.f32 %v937, %v937
    %v956 = vmul.f32 %v938, %v938
    %v957 = vsub.f32 %v953, %v955
    %v958 = vsub.f32 %v954, %v956
    %v959 = vadd.f32 %v957, 1e-05
    %v960 = vadd.f32 %v958, 1e-05
    %v961 = vrsqrt.pop %v959
    %v962 = vrsqrt.pop %v960
    %v963 = vmul.f32 %v70, %v961
    %v964 = vmul.f32 %v71, %v962
    %v965 = vmul.f32 %v937, %v963
    %v966 = vmul.f32 %v938, %v964
    %v969 = vrot.slane %v965, 7
    %v970 = vrot.slane %v966, 7
    %v973 = vsub.f32 %v70, %v969
    %v974 = vsub.f32 %v71, %v970
    %v975 = vlaneseq
    %v976 = vshrl.u32 %v975, 7
    %v977 = vsub.s32 1, %v976
    %v978 = vrot.slane %v963, %v977
    %v979 = vlaneseq
    %v980 = vshrl.u32 %v979, 7
    %v981 = vsub.s32 1, %v980
    %v982 = vrot.slane %v964, %v981
    %v983 = vmul.f32 %v919, %v978
    %v984 = vmul.f32 %v921, %v982
    %v985 = vlaneseq
    %v986 = vshrl.u32 %v985, 7
    %v987 = vsub.s32 2, %v986
    %v988 = vrot.slane %v973, %v987
    %v989 = vlaneseq
    %v990 = vshrl.u32 %v989, 7
    %v991 = vsub.s32 2, %v990
    %v992 = vrot.slane %v974, %v991
    %v993 = vadd.f32 %v983, %v988
    %v994 = vadd.f32 %v984, %v992
    %v995 = vmax.f32 %v993, 0.0
    %v996 = vmax.f32 %v994, 0.0
    %v997 = vpack.c.bf16 %v995, %v995
    %v998 = vpack.c.bf16 %v996, %v996
    %v999 = vld [vmem:[#allocation5 + $0x200] sm:$0xf]
    %v1000 = vld [vmem:[#allocation5 + $0x204] sm:$0xf]
    %v1001 = vld [vmem:[#allocation5 + $0x208] sm:$0xf]
    %v1002 = vld [vmem:[#allocation5 + $0x20c] sm:$0xf]
    %v1003 = vld [vmem:[#allocation5 + $0x210] sm:$0xf]
    %v1004 = vld [vmem:[#allocation5 + $0x214] sm:$0xf]
    %v1005 = vld [vmem:[#allocation5 + $0x218] sm:$0xf]
    %v1006 = vld [vmem:[#allocation5 + $0x21c] sm:$0xf]
    %v1007 = vld [vmem:[#allocation5 + $0x220] sm:$0xf]
    %v1008 = vld [vmem:[#allocation5 + $0x224] sm:$0xf]
    %v1009 = vld [vmem:[#allocation5 + $0x228] sm:$0xf]
    %v1010 = vld [vmem:[#allocation5 + $0x22c] sm:$0xf]
    %v1011 = vld [vmem:[#allocation5 + $0x230] sm:$0xf]
    %v1012 = vld [vmem:[#allocation5 + $0x234] sm:$0xf]
    %v1013 = vld [vmem:[#allocation5 + $0x238] sm:$0xf]
    %v1014 = vld [vmem:[#allocation5 + $0x23c] sm:$0xf]
    %v1015 = vld [vmem:[#allocation5 + $0x240] sm:$0xf]
    %v1016 = vld [vmem:[#allocation5 + $0x244] sm:$0xf]
    %v1017 = vld [vmem:[#allocation5 + $0x248] sm:$0xf]
    %v1018 = vld [vmem:[#allocation5 + $0x24c] sm:$0xf]
    %v1019 = vld [vmem:[#allocation5 + $0x250] sm:$0xf]
    %v1020 = vld [vmem:[#allocation5 + $0x254] sm:$0xf]
    %v1021 = vld [vmem:[#allocation5 + $0x258] sm:$0xf]
    %v1022 = vld [vmem:[#allocation5 + $0x25c] sm:$0xf]
    %v1023 = vld [vmem:[#allocation5 + $0x260] sm:$0xf]
    %v1024 = vld [vmem:[#allocation5 + $0x264] sm:$0xf]
    %v1025 = vld [vmem:[#allocation5 + $0x268] sm:$0xf]
    %v1026 = vld [vmem:[#allocation5 + $0x26c] sm:$0xf]
    %v1027 = vld [vmem:[#allocation5 + $0x270] sm:$0xf]
    %v1028 = vld [vmem:[#allocation5 + $0x274] sm:$0xf]
    %v1029 = vld [vmem:[#allocation5 + $0x278] sm:$0xf]
    %v1030 = vld [vmem:[#allocation5 + $0x27c] sm:$0xf]
    %v1031 = vlaneseq
    %v1032 = vshrl.u32 %v1031, 7
    %v1033 = vsub.s32 3, %v1032
    %v1034 = vrot.slane %v70, %v1033
    %v1067 = vunpack.c.l.b16 %v999
    %v1068 = vunpack.c.l.b16 %v1000
    %v1069 = vunpack.c.l.b16 %v1001
    %v1070 = vunpack.c.l.b16 %v1002
    %v1071 = vunpack.c.l.b16 %v1003
    %v1072 = vunpack.c.l.b16 %v1004
    %v1073 = vunpack.c.l.b16 %v1005
    %v1074 = vunpack.c.l.b16 %v1006
    %v1075 = vunpack.c.l.b16 %v1007
    %v1076 = vunpack.c.l.b16 %v1008
    %v1077 = vunpack.c.l.b16 %v1009
    %v1078 = vunpack.c.l.b16 %v1010
    %v1079 = vunpack.c.l.b16 %v1011
    %v1080 = vunpack.c.l.b16 %v1012
    %v1081 = vunpack.c.l.b16 %v1013
    %v1082 = vunpack.c.l.b16 %v1014
    %v1083 = vunpack.c.l.b16 %v1015
    %v1084 = vunpack.c.l.b16 %v1016
    %v1085 = vunpack.c.l.b16 %v1017
    %v1086 = vunpack.c.l.b16 %v1018
    %v1087 = vunpack.c.l.b16 %v1019
    %v1088 = vunpack.c.l.b16 %v1020
    %v1089 = vunpack.c.l.b16 %v1021
    %v1090 = vunpack.c.l.b16 %v1022
    %v1091 = vunpack.c.l.b16 %v1023
    %v1092 = vunpack.c.l.b16 %v1024
    %v1093 = vunpack.c.l.b16 %v1025
    %v1094 = vunpack.c.l.b16 %v1026
    %v1095 = vunpack.c.l.b16 %v1027
    %v1096 = vunpack.c.l.b16 %v1028
    %v1097 = vunpack.c.l.b16 %v1029
    %v1098 = vunpack.c.l.b16 %v1030
    %v1099 = vpack.c.b16 %v1068, %v1067
    %v1100 = vpack.c.b16 %v1070, %v1069
    %v1101 = vpack.c.b16 %v1072, %v1071
    %v1102 = vpack.c.b16 %v1074, %v1073
    %v1103 = vpack.c.b16 %v1076, %v1075
    %v1104 = vpack.c.b16 %v1078, %v1077
    %v1105 = vpack.c.b16 %v1080, %v1079
    %v1106 = vpack.c.b16 %v1082, %v1081
    %v1107 = vpack.c.b16 %v1084, %v1083
    %v1108 = vpack.c.b16 %v1086, %v1085
    %v1109 = vpack.c.b16 %v1088, %v1087
    %v1110 = vpack.c.b16 %v1090, %v1089
    %v1111 = vpack.c.b16 %v1092, %v1091
    %v1112 = vpack.c.b16 %v1094, %v1093
    %v1113 = vpack.c.b16 %v1096, %v1095
    %v1114 = vpack.c.b16 %v1098, %v1097
    %1131 = vmatprep.subr.bf16.mxu0 0
    %1132 = vmatpush1.bf16.msra.mxu0 %v1106
    %1133 = vmatprep.subr.bf16.mxu0 0
    %1134 = vmatpush1.bf16.msra.mxu0 %v1105
    %1135 = vmatprep.subr.bf16.mxu0 0
    %1136 = vmatpush1.bf16.msra.mxu0 %v1104
    %1137 = vmatprep.subr.bf16.mxu0 0
    %1138 = vmatpush1.bf16.msra.mxu0 %v1103
    %1139 = vmatprep.subr.bf16.mxu0 0
    %1140 = vmatpush1.bf16.msra.mxu0 %v1102
    %1141 = vmatprep.subr.bf16.mxu0 0
    %1142 = vmatpush1.bf16.msra.mxu0 %v1101
    %1143 = vmatprep.subr.bf16.mxu0 0
    %1144 = vmatpush1.bf16.msra.mxu0 %v1100
    %1145 = vmatprep.subr.bf16.mxu0 0
    %1146 = vmatpush1.bf16.msra.mxu0 %v1099
    %1147 = vmatprep.subr.bf16.mxu0 0
    %1148 = vmatpush2.bf16.msra.mxu0 %v1114
    %1149 = vmatprep.subr.bf16.mxu0 0
    %1150 = vmatpush2.bf16.msra.mxu0 %v1113
    %1151 = vmatprep.subr.bf16.mxu0 0
    %1152 = vmatpush2.bf16.msra.mxu0 %v1112
    %1153 = vmatprep.subr.bf16.mxu0 0
    %1154 = vmatpush2.bf16.msra.mxu0 %v1111
    %1155 = vmatprep.subr.bf16.mxu0 0
    %1156 = vmatpush2.bf16.msra.mxu0 %v1110
    %1157 = vmatprep.subr.bf16.mxu0 0
    %1158 = vmatpush2.bf16.msra.mxu0 %v1109
    %1159 = vmatprep.subr.bf16.mxu0 0
    %1160 = vmatpush2.bf16.msra.mxu0 %v1108
    %1161 = vmatprep.subr.bf16.mxu0 0
    %1162 = vmatpush2.bf16.msra.mxu0 %v1107
    %1163 = vmatprep.mubr.bf16.mxu0 %v998
    %1164 = vmatmul.mubr.bf16.gmra.mxu0 %v997
    %v1165 = vpop.f32.mrf.mxu0
    %v1166 = vadd.f32 %v1034, %v1165
    %v1167 = vpop.f32.mrf.mxu0
    %v1168 = vpop.f32.mrf.mxu0
    %v1169 = vpop.f32.mrf.mxu0
    %1170 = vdwg.mxu0
    %1171 = vst [vmem:[#allocation10] sm:$0xff] %v1166
    %1172 = vst [vmem:[#allocation10 + $0x8] sm:$0xff] %v995
    %1173 = vst [vmem:[#allocation10 + $0x10] sm:$0xff] %v996
    // Predicated region
    $region34: #{tpu_custom_call.1} parent=1 // pred_check
      _
    $region35: #{tpu_custom_call.1} parent=1 // pred_check_branch
      %1175 = sbr.rel (0) target = $region37
    $region36: #{tpu_custom_call.1} parent=1 // pred_region
      %s1177 = ssub.s32 384, 384
      %1178 = vsyncadd [#allocation4], %s1177
      %s1180 = sshll.u32 [#allocation10], 4
      %s1181 = int_to_ptr.vmem [resolvable:$true] %s1180
      %1183 = dma.vmem_to_hbm [thread:$0]  %s1181, 384, %s4, [#allocation4]
    $region37: #{tpu_custom_call.1} parent=1 // pred_fallthru
      _
    // Predicated region
    $region38: #{tpu_custom_call.1} parent=1 // pred_check
      _
    $region39: #{tpu_custom_call.1} parent=1 // pred_check_branch
      %1185 = sbr.rel (0) target = $region41
    $region40: #{tpu_custom_call.1} parent=1 // pred_region
      %1186 = dma.done [#allocation4], 384
    $region41: #{tpu_custom_call.1} parent=1 // pred_fallthru
      _
    %1187 = vsyncpa [#allocation3], 1
    %1188 = vsyncpa [#allocation6], 1
    %1189 = vsyncpa [#allocation9], 1
    %1190 = vsyncpa [#allocation4], 1

</llo_original>
